<compile_context>
chip_gen: v7x
topology: tpu7x:2x2x1
jax: 0.10.0
libtpu: 0.0.40
codegen_flags: <defaults>
</compile_context>

<pallas_src>
import jax
import jax.numpy as jnp
from jax import lax
from jax.experimental import pallas as pl
from jax.experimental.pallas import tpu as pltpu


# ----------------------------------------------------------------------------
# Fused kernel: adj_tile = sigmoid( z_a @ z_b.T ), z_a/z_b already dropped-out bf16
# ----------------------------------------------------------------------------
def _inner_product_sigmoid_kernel(za_ref, zb_ref, o_ref):
    # za_ref: (tm, D) bf16 row tile of z_drop; zb_ref: (tn, D) bf16 row tile
    # (columns of z_drop.T).  NT matmul contracting the latent dim -> (tm, tn),
    # accumulated in f32 on the MXU.  No explicit transpose.
    s = lax.dot_general(
        za_ref[...], zb_ref[...],
        dimension_numbers=(((1,), (1,)), ((), ())),
        preferred_element_type=jnp.float32,
    )
    # sigmoid(x) = 1 / (1 + exp(-x)); exp and approx reciprocal both issue on
    # the EUP slot (free relative to the dominant HBM writeback).
    o_ref[...] = pl.reciprocal(1.0 + jnp.exp(-s), approx=True)


# ----------------------------------------------------------------------------
# Tile-size selection helpers
# ----------------------------------------------------------------------------
def _largest_tile(n, target, align):
    """Largest t <= target that divides n and is a multiple of `align`.
    Falls back to n (full extent block, always legal) if none exists."""
    t = (min(target, n) // align) * align
    while t > 0 and n % t != 0:
        t -= align
    return t if t > 0 else n


# ----------------------------------------------------------------------------
# Wrapper reproducing InnerProductDecoder.forward (training mode, dropout active)
# ----------------------------------------------------------------------------
def inner_product_decoder_forward(z, *, dropout_rate=0.1, key=None, tm=512, tn=1024):
    """adj = sigmoid(dropout(z) @ dropout(z).T)."""
    z = z.astype(jnp.float32)
    n, d = z.shape
    assert 0.0 <= dropout_rate < 1.0, "dropout_rate must be in [0, 1)"

    # Pre-fuse inverted dropout + bf16 cast in a single XLA elementwise pass.
    # The SAME dropped-out array feeds both sides of the inner product.
    if dropout_rate > 0.0:
        if key is None:
            key = jax.random.PRNGKey(0)
        keep = jax.random.bernoulli(key, 1.0 - dropout_rate, (n, d))
        z_drop = jnp.where(keep, z * jnp.float32(1.0 / (1.0 - dropout_rate)), 0.0)
    else:
        z_drop = z                      # eval path: no mask, no extra operand
    z_bf16 = z_drop.astype(jnp.bfloat16)

    # Lane-dense output tiles; rows aligned to sublanes (8), cols to lanes (128).
    tm = _largest_tile(n, tm, 8)
    tn = _largest_tile(n, tn, 128)

    # Megacore guard: keep >=2 blocks along at least one parallel axis if possible.
    if n // tm == 1 and n // tn == 1:
        half = _largest_tile(n, max(tm // 2, 8), 8)
        if n // half >= 2:
            tm = half

    assert n % tm == 0 and n % tn == 0
    grid = (n // tm, n // tn)

    return pl.pallas_call(
        _inner_product_sigmoid_kernel,
        out_shape=jax.ShapeDtypeStruct((n, n), jnp.float32),
        grid=grid,
        in_specs=[
            # A-side row tile: fixed across the inner j sweep -> DMA skipped on revisits.
            pl.BlockSpec((tm, d), lambda i, j: (i, 0)),
            # B-side row tile (columns of z.T): re-fetched per outer step (cheap, D small).
            pl.BlockSpec((tn, d), lambda i, j: (j, 0)),
        ],
        out_specs=pl.BlockSpec((tm, tn), lambda i, j: (i, j)),
        compiler_params=pltpu.CompilerParams(
            dimension_semantics=("parallel", "parallel"),
            vmem_limit_bytes=32 * 1024 * 1024,   # safe on v5e/v6e/v7x; usage ~4.5 MiB
        ),
    )(z_bf16, z_bf16)


if __name__ == "__main__":
    key = jax.random.PRNGKey(0)
    N, D = 256, 64  # N nodes, D latent dims (GAE-style latent)
    z = jax.random.normal(key, (N, D), dtype=jnp.float32)

    # 1) Deterministic sanity check (dropout off): compare against jnp reference.
    adj0 = inner_product_decoder_forward(z, dropout_rate=0.0)
    adj0 = jax.block_until_ready(adj0)
    ref0 = jax.nn.sigmoid(z @ z.T)
    assert adj0.shape == (N, N) and adj0.dtype == jnp.float32
    # bf16 MXU inputs + approx reciprocal -> small tolerance on the sigmoid output.
    assert bool(jnp.max(jnp.abs(adj0 - ref0)) < 3e-2)

    # 2) Forward as in the module (dropout=0.1, training mode).
    adj = inner_product_decoder_forward(z, dropout_rate=0.1,
                                        key=jax.random.PRNGKey(42))
    adj = jax.block_until_ready(adj)
    assert adj.shape == (N, N) and adj.dtype == jnp.float32
    assert bool(jnp.all(jnp.isfinite(adj)))
    assert bool(jnp.all((adj >= 0.0) & (adj <= 1.0)))

    print("KERNEL_OK")
</pallas_src>

<mosaic_0001>
module attributes {stable_mosaic.version = 11 : i64} {
  func.func @_inner_product_sigmoid_kernel(%arg0: i32, %arg1: i32, %arg2: memref<128x64xbf16, #tpu.memory_space<vmem>>, %arg3: memref<256x64xbf16, #tpu.memory_space<vmem>>, %arg4: memref<128x256xf32, #tpu.memory_space<vmem>>) attributes {dimension_semantics = [#tpu.dimension_semantics<parallel>, #tpu.dimension_semantics<parallel>], iteration_bounds = array<i64: 2, 1>, scalar_prefetch = 0 : i64, scratch_operands = 0 : i64, tpu.core_type = #tpu.core_type<tc>, window_params = [{transform_indices = @transform_0, window_bounds = array<i64: 128, 64>}, {transform_indices = @transform_1, window_bounds = array<i64: 256, 64>}, {transform_indices = @transform_2, window_bounds = array<i64: 128, 256>}]} {
    %c0 = arith.constant 0 : index
    %c0_0 = arith.constant 0 : index
    %0 = vector.load %arg2[%c0, %c0_0] : memref<128x64xbf16, #tpu.memory_space<vmem>>, vector<128x64xbf16>
    %c0_1 = arith.constant 0 : index
    %c0_2 = arith.constant 0 : index
    %1 = vector.load %arg3[%c0_1, %c0_2] : memref<256x64xbf16, #tpu.memory_space<vmem>>, vector<256x64xbf16>
    %cst = arith.constant dense<0.000000e+00> : vector<128x256xf32>
    %2 = tpu.matmul %0, %1, %cst {dimension_numbers = #tpu.dot_dimension_numbers<[1], [1], [0], [0], [0, 0, 1, 0], [], []>} : vector<128x64xbf16>, vector<256x64xbf16>, vector<128x256xf32> -> vector<128x256xf32>
    %cst_3 = arith.constant 0.000000e+00 : f32
    %3 = vector.broadcast %cst_3 : f32 to vector<128x256xf32>
    %4 = arith.subf %3, %2 : vector<128x256xf32>
    %5 = math.exp %4 : vector<128x256xf32>
    %cst_4 = arith.constant 1.000000e+00 : f32
    %6 = vector.broadcast %cst_4 : f32 to vector<128x256xf32>
    %7 = arith.addf %6, %5 : vector<128x256xf32>
    %8 = tpu.reciprocal %7 {approx = true} : vector<128x256xf32> -> vector<128x256xf32>
    %c0_5 = arith.constant 0 : index
    %c0_6 = arith.constant 0 : index
    %9 = vector.load %arg4[%c0_5, %c0_6] : memref<128x256xf32, #tpu.memory_space<vmem>>, vector<128x256xf32>
    tpu.vector_store %arg4[%c0_5, %c0_6], %8 {strides = array<i32>} : memref<128x256xf32, #tpu.memory_space<vmem>>, vector<128x256xf32>,
    return
  }
  func.func @transform_0(%arg0: i32, %arg1: i32) -> (i32, i32) {
    %c0_i32 = arith.constant 0 : i32
    %c0_i32_0 = arith.constant 0 : i32
    return %arg0, %c0_i32 : i32, i32
  }
  func.func @transform_1(%arg0: i32, %arg1: i32) -> (i32, i32) {
    %c0_i32 = arith.constant 0 : i32
    %c0_i32_0 = arith.constant 0 : i32
    return %arg1, %c0_i32 : i32, i32
  }
  func.func @transform_2(%arg0: i32, %arg1: i32) -> (i32, i32) {
    %c0_i32 = arith.constant 0 : i32
    return %arg0, %arg1 : i32, i32
  }
}

</mosaic_0001>

<llo_original>
// kernel: tpu_custom_call.1
$region0: #{tpu_custom_call.1}
  #allocation0 [shape = 'u32[]', space=smem, size = 0x4, offset = 0x4, fixed_abs, tag = 'smem constant byte address 0x4 - core index']
  #allocation1 [shape = 'u32[144,128]{1,0:T(1,128)}', space=vmem, size = 0x12000, scoped, tag = 'internal scratch']
  %s0 = inlined_call_operand.vmem [shape: bf16[256,64], index: 0, kind: input, shape index: {}]
  %s1 = inlined_call_operand.vmem [shape: bf16[256,64], index: 1, kind: input, shape index: {}]
  %s2 = inlined_call_operand.hbm [shape: f32[256,256], index: 2, kind: output, shape index: {}]
  %s3 = sld [smem:[#allocation0]]
  $region41: #{tpu_custom_call.1} parent=0
    _
  %s5 = ssub.s32 1, %s3
  %s6 = scalar_select 0, %s5, %s3
  $region1: #{tpu_custom_call.1} parent=0
    #allocation2 [shape = 'u8[262144]{0}', space=vmem, size = 0x40000, scoped, tag = 'output window, operand 0']
    #allocation3 [shape = 's32[2]{0}', space=sflag, size = 0x8, scoped, tag = 'scoped memory for tpu_custom_call.1']
    %7 = vsyncpa [#allocation3], 0
    %s8 = scalar_lea.sflag [#allocation3], 1
    %9 = vsyncpa %s8, 0
    loop: start=0, step=1, limit=4
    $region2: #{tpu_custom_call.1} parent=1 // loop_pre_header
      _
    $region3: #{tpu_custom_call.1} parent=1 // loop_header
      %s11 = sphi 0, %s15
      %p12 = scmp.ge.s32.totalorder %s11, 4
      %s18 = sphi 0, %s30
      %s19 = sphi 0, %s26
      %s20 = sphi 0, %s18
      %s21 = sphi 0, %s19
      %s22 = sphi 0, %s20
      %s23 = sphi 0, %s21
      %s33 = sphi 0, %s35
      %s36 = sphi 0, %s33
      %s37 = sphi 0, %s36
      %s53 = sphi 0, %s37
      %s59 = sphi 0, %s61
      %s62 = sphi 0, %s59
      %s63 = sphi 0, %s62
      %s79 = sphi 0, %s63
      %s87 = sphi 0, %s89
      %s90 = sphi 0, %s87
      %s91 = sphi 0, %s90
      %s107 = sphi 0, %s91
    $region4: #{tpu_custom_call.1} parent=1 // loop_header_branch
      %14 = sbr.rel (%p12) target = $region8
    $region5: #{tpu_custom_call.1} parent=1 // loop_body
      %s16 = ssub.s32 %s11, 1
      %s17 = ssub.s32 %s11, 2
      %s24 = sadd.s32 1, %s19
      %p25 = scmp.ge.s32.totalorder %s24, 1
      %s26 = scalar_select %p25, 0, %s24
      %s27 = sadd.s32 1, %s18
      %s28 = scalar_select %p25, %s27, %s18
      %p29 = scmp.ge.s32.totalorder %s28, 2
      %s30 = scalar_select %p29, 0, %s28
      %s31 = ssub.s32 %s18, %s30
      %p32 = scmp.eq.s32.totalorder %s31, 0
      %s34 = sadd.s32 %s33, 1
      %s35 = scalar_select %p32, %s33, %s34
      %p38 = pneg %p32
      %p39 = scmp.eq.s32.totalorder %s11, 1
      %p40 = por %p38, %p39
      %p41 = scmp.ne.s32.totalorder %s33, %s36
      %p42 = scmp.eq.s32.totalorder %s11, 0
      %p43 = por %p41, %p42
      %p44 = scmp.ne.s32.totalorder %s33, %s36
      %p45 = scmp.eq.s32.totalorder %s16, 1
      %p46 = por %p44, %p45
      %p47 = scmp.ne.s32.totalorder %s36, %s37
      %p48 = scmp.eq.s32.totalorder %s16, 0
      %p49 = por %p47, %p48
      %p50 = scmp.ne.s32.totalorder %s36, %s37
      %p51 = scmp.eq.s32.totalorder %s17, 1
      %p52 = por %p50, %p51
      %p54 = scmp.ne.s32.totalorder %s37, %s53
      %p55 = scmp.eq.s32.totalorder %s17, 0
      %p56 = por %p54, %p55
      %s57 = ssub.s32 %s19, %s26
      %p58 = scmp.eq.s32.totalorder %s57, 0
      %s60 = sadd.s32 %s59, 1
      %s61 = scalar_select %p58, %s59, %s60
      %p64 = pneg %p58
      %p65 = scmp.eq.s32.totalorder %s11, 1
      %p66 = por %p64, %p65
      %p67 = scmp.ne.s32.totalorder %s59, %s62
      %p68 = scmp.eq.s32.totalorder %s11, 0
      %p69 = por %p67, %p68
      %p70 = scmp.ne.s32.totalorder %s59, %s62
      %p71 = scmp.eq.s32.totalorder %s16, 1
      %p72 = por %p70, %p71
      %p73 = scmp.ne.s32.totalorder %s62, %s63
      %p74 = scmp.eq.s32.totalorder %s16, 0
      %p75 = por %p73, %p74
      %p76 = scmp.ne.s32.totalorder %s62, %s63
      %p77 = scmp.eq.s32.totalorder %s17, 1
      %p78 = por %p76, %p77
      %p80 = scmp.ne.s32.totalorder %s63, %s79
      %p81 = scmp.eq.s32.totalorder %s17, 0
      %p82 = por %p80, %p81
      %s83 = ssub.s32 %s18, %s30
      %s84 = ssub.s32 %s19, %s26
      %s85 = sor.u32 %s83, %s84
      %p86 = scmp.eq.s32.totalorder %s85, 0
      %s88 = sadd.s32 %s87, 1
      %s89 = scalar_select %p86, %s87, %s88
      %p92 = pneg %p86
      %p93 = scmp.eq.s32.totalorder %s11, 1
      %p94 = por %p92, %p93
      %p95 = scmp.ne.s32.totalorder %s87, %s90
      %p96 = scmp.eq.s32.totalorder %s11, 0
      %p97 = por %p95, %p96
      %p98 = scmp.ne.s32.totalorder %s87, %s90
      %p99 = scmp.eq.s32.totalorder %s16, 1
      %p100 = por %p98, %p99
      %p101 = scmp.ne.s32.totalorder %s90, %s91
      %p102 = scmp.eq.s32.totalorder %s16, 0
      %p103 = por %p101, %p102
      %p104 = scmp.ne.s32.totalorder %s90, %s91
      %p105 = scmp.eq.s32.totalorder %s17, 1
      %p106 = por %p104, %p105
      %p108 = scmp.ne.s32.totalorder %s91, %s107
      %p109 = scmp.eq.s32.totalorder %s17, 0
      %p110 = por %p108, %p109
      %p111 = scmp.le.s32.totalorder 1, %s11
      %p112 = scmp.lt.s32.totalorder %s11, 3
      %p113 = pnand %p111, %p112
      %p114 = pneg %p113
      // Predicated region
      $region9: #{tpu_custom_call.1} parent=5 // pred_check
        _
      $region10: #{tpu_custom_call.1} parent=5 // pred_check_branch
        %116 = sbr.rel (%p113) target = $region12
      $region11: #{tpu_custom_call.1} parent=5 // pred_region
        %s117 = ssub.s32 %s11, 1
        // Predicated region
        $region13: #{tpu_custom_call.1} parent=11 // pred_check
          %p118 = pneg %p75
        $region14: #{tpu_custom_call.1} parent=11 // pred_check_branch
          %120 = sbr.rel (%p118) target = $region16
        $region15: #{tpu_custom_call.1} parent=11 // pred_region
          %s121 = smul.u32 32, %s21
          %p122 = scmp.lt.s32.totalorder %s121, 31
          %s123 = scalar_select %p122, %s121, 31
          %s124 = smul.addr %s123, 4
          %s125 = scalar_lea.vmem %s1, %s124
          %s126 = smul.u32 32, %s21
        $region16: #{tpu_custom_call.1} parent=11 // pred_fallthru
          _
      $region12: #{tpu_custom_call.1} parent=5 // pred_fallthru
        _
      %p127 = scmp.lt.s32.totalorder %s11, 2
      // Predicated region
      $region17: #{tpu_custom_call.1} parent=5 // pred_check
        %p128 = pneg %p127
      $region18: #{tpu_custom_call.1} parent=5 // pred_check_branch
        %130 = sbr.rel (%p128) target = $region20
      $region19: #{tpu_custom_call.1} parent=5 // pred_region
        // Predicated region
        $region21: #{tpu_custom_call.1} parent=19 // pred_check
          %p131 = pneg %p43
        $region22: #{tpu_custom_call.1} parent=19 // pred_check_branch
          %133 = sbr.rel (%p131) target = $region24
        $region23: #{tpu_custom_call.1} parent=19 // pred_region
          %s134 = smul.u32 16, %s18
          %p135 = scmp.lt.s32.totalorder %s134, 31
          %s136 = scalar_select %p135, %s134, 31
          %s137 = smul.addr %s136, 4
          %s138 = scalar_lea.vmem %s0, %s137
          %s139 = smul.u32 16, %s18
        $region24: #{tpu_custom_call.1} parent=19 // pred_fallthru
          _
      $region20: #{tpu_custom_call.1} parent=5 // pred_fallthru
        _
      %p140 = scmp.le.s32.totalorder 1, %s11
      %p141 = scmp.lt.s32.totalorder %s11, 3
      %p142 = pnand %p140, %p141
      %p143 = pneg %p142
      // Predicated region
      $region25: #{tpu_custom_call.1} parent=5 // pred_check
        _
      $region26: #{tpu_custom_call.1} parent=5 // pred_check_branch
        %145 = sbr.rel (%p142) target = $region28
      $region27: #{tpu_custom_call.1} parent=5 // pred_region
        %s146 = ssub.s32 %s11, 1
        %s147 = smul.u32 16, %s20
        %p148 = scmp.lt.s32.totalorder %s147, 31
        %s149 = scalar_select %p148, %s147, 31
        %s150 = smul.addr %s149, 4
        %s151 = scalar_lea.vmem %s0, %s150
        %p152 = pneg %p49
        %p153 = pneg %p46
        %s154 = smul.u32 32, %s21
        %p155 = scmp.lt.s32.totalorder %s154, 31
        %s156 = scalar_select %p155, %s154, 31
        %s157 = smul.addr %s156, 4
        %s158 = scalar_lea.vmem %s1, %s157
        %p159 = pneg %p75
        %p160 = pneg %p72
        %p161 = pneg %p103
        %p162 = pneg %p100
        %s163 = sand.u32 %s90, 1
        %s164 = scalar_lea.sflag [#allocation3], %s163
        %s165 = sand.u32 %s90, 1
        %s166 = smul.addr %s165, 256
        %s167 = scalar_lea.vmem [#allocation2], %s166
        %s168 = smul.u32 16, %s20
        %p169 = scmp.lt.s32.totalorder %s168, 31
        %s170 = scalar_select %p169, %s168, 31
        %s171 = smul.addr %s170, 4
        %s172 = scalar_lea.vmem %s0, %s171
        %s173 = smul.u32 16, %s20
        %s174 = smul.u32 32, %s21
        %p175 = scmp.lt.s32.totalorder %s174, 31
        %s176 = scalar_select %p175, %s174, 31
        %s177 = smul.addr %s176, 4
        %s178 = scalar_lea.vmem %s1, %s177
        %s179 = smul.u32 32, %s21
        %s180 = smul.u32 16, %s20
        %s181 = smul.u32 2, %s21
        %v183 = vld [vmem:[%s172] sm:$0xf]
        %v184 = vld [vmem:[%s172 + $0x4] sm:$0xf]
        %v185 = vld [vmem:[%s172 + $0x8] sm:$0xf]
        %v186 = vld [vmem:[%s172 + $0xc] sm:$0xf]
        %v187 = vld [vmem:[%s172 + $0x10] sm:$0xf]
        %v188 = vld [vmem:[%s172 + $0x14] sm:$0xf]
        %v189 = vld [vmem:[%s172 + $0x18] sm:$0xf]
        %v190 = vld [vmem:[%s172 + $0x1c] sm:$0xf]
        %v191 = vld [vmem:[%s172 + $0x20] sm:$0xf]
        %v192 = vld [vmem:[%s172 + $0x24] sm:$0xf]
        %v193 = vld [vmem:[%s172 + $0x28] sm:$0xf]
        %v194 = vld [vmem:[%s172 + $0x2c] sm:$0xf]
        %v195 = vld [vmem:[%s172 + $0x30] sm:$0xf]
        %v196 = vld [vmem:[%s172 + $0x34] sm:$0xf]
        %v197 = vld [vmem:[%s172 + $0x38] sm:$0xf]
        %v198 = vld [vmem:[%s172 + $0x3c] sm:$0xf]
        %v199 = vld [vmem:[%s178] sm:$0xf]
        %v200 = vld [vmem:[%s178 + $0x4] sm:$0xf]
        %v201 = vld [vmem:[%s178 + $0x8] sm:$0xf]
        %v202 = vld [vmem:[%s178 + $0xc] sm:$0xf]
        %v203 = vld [vmem:[%s178 + $0x10] sm:$0xf]
        %v204 = vld [vmem:[%s178 + $0x14] sm:$0xf]
        %v205 = vld [vmem:[%s178 + $0x18] sm:$0xf]
        %v206 = vld [vmem:[%s178 + $0x1c] sm:$0xf]
        %v207 = vld [vmem:[%s178 + $0x20] sm:$0xf]
        %v208 = vld [vmem:[%s178 + $0x24] sm:$0xf]
        %v209 = vld [vmem:[%s178 + $0x28] sm:$0xf]
        %v210 = vld [vmem:[%s178 + $0x2c] sm:$0xf]
        %v211 = vld [vmem:[%s178 + $0x30] sm:$0xf]
        %v212 = vld [vmem:[%s178 + $0x34] sm:$0xf]
        %v213 = vld [vmem:[%s178 + $0x38] sm:$0xf]
        %v214 = vld [vmem:[%s178 + $0x3c] sm:$0xf]
        %v215 = vld [vmem:[%s178 + $0x40] sm:$0xf]
        %v216 = vld [vmem:[%s178 + $0x44] sm:$0xf]
        %v217 = vld [vmem:[%s178 + $0x48] sm:$0xf]
        %v218 = vld [vmem:[%s178 + $0x4c] sm:$0xf]
        %v219 = vld [vmem:[%s178 + $0x50] sm:$0xf]
        %v220 = vld [vmem:[%s178 + $0x54] sm:$0xf]
        %v221 = vld [vmem:[%s178 + $0x58] sm:$0xf]
        %v222 = vld [vmem:[%s178 + $0x5c] sm:$0xf]
        %v223 = vld [vmem:[%s178 + $0x60] sm:$0xf]
        %v224 = vld [vmem:[%s178 + $0x64] sm:$0xf]
        %v225 = vld [vmem:[%s178 + $0x68] sm:$0xf]
        %v226 = vld [vmem:[%s178 + $0x6c] sm:$0xf]
        %v227 = vld [vmem:[%s178 + $0x70] sm:$0xf]
        %v228 = vld [vmem:[%s178 + $0x74] sm:$0xf]
        %v229 = vld [vmem:[%s178 + $0x78] sm:$0xf]
        %v230 = vld [vmem:[%s178 + $0x7c] sm:$0xf]
        %v247 = vunpack.c.l.b16 %v183
        %v248 = vunpack.c.l.b16 %v184
        %v249 = vunpack.c.l.b16 %v185
        %v250 = vunpack.c.l.b16 %v186
        %v251 = vunpack.c.l.b16 %v187
        %v252 = vunpack.c.l.b16 %v188
        %v253 = vunpack.c.l.b16 %v189
        %v254 = vunpack.c.l.b16 %v190
        %v255 = vunpack.c.l.b16 %v191
        %v256 = vunpack.c.l.b16 %v192
        %v257 = vunpack.c.l.b16 %v193
        %v258 = vunpack.c.l.b16 %v194
        %v259 = vunpack.c.l.b16 %v195
        %v260 = vunpack.c.l.b16 %v196
        %v261 = vunpack.c.l.b16 %v197
        %v262 = vunpack.c.l.b16 %v198
        %v263 = vpack.c.b16 %v248, %v247
        %v264 = vpack.c.b16 %v250, %v249
        %v265 = vpack.c.b16 %v252, %v251
        %v266 = vpack.c.b16 %v254, %v253
        %v267 = vpack.c.b16 %v256, %v255
        %v268 = vpack.c.b16 %v258, %v257
        %v269 = vpack.c.b16 %v260, %v259
        %v270 = vpack.c.b16 %v262, %v261
        %v303 = vunpack.c.l.b16 %v199
        %v304 = vunpack.c.l.b16 %v200
        %v305 = vunpack.c.l.b16 %v201
        %v306 = vunpack.c.l.b16 %v202
        %v307 = vunpack.c.l.b16 %v203
        %v308 = vunpack.c.l.b16 %v204
        %v309 = vunpack.c.l.b16 %v205
        %v310 = vunpack.c.l.b16 %v206
        %v311 = vunpack.c.l.b16 %v207
        %v312 = vunpack.c.l.b16 %v208
        %v313 = vunpack.c.l.b16 %v209
        %v314 = vunpack.c.l.b16 %v210
        %v315 = vunpack.c.l.b16 %v211
        %v316 = vunpack.c.l.b16 %v212
        %v317 = vunpack.c.l.b16 %v213
        %v318 = vunpack.c.l.b16 %v214
        %v319 = vunpack.c.l.b16 %v215
        %v320 = vunpack.c.l.b16 %v216
        %v321 = vunpack.c.l.b16 %v217
        %v322 = vunpack.c.l.b16 %v218
        %v323 = vunpack.c.l.b16 %v219
        %v324 = vunpack.c.l.b16 %v220
        %v325 = vunpack.c.l.b16 %v221
        %v326 = vunpack.c.l.b16 %v222
        %v327 = vunpack.c.l.b16 %v223
        %v328 = vunpack.c.l.b16 %v224
        %v329 = vunpack.c.l.b16 %v225
        %v330 = vunpack.c.l.b16 %v226
        %v331 = vunpack.c.l.b16 %v227
        %v332 = vunpack.c.l.b16 %v228
        %v333 = vunpack.c.l.b16 %v229
        %v334 = vunpack.c.l.b16 %v230
        %v335 = vpack.c.b16 %v304, %v303
        %v336 = vpack.c.b16 %v306, %v305
        %v337 = vpack.c.b16 %v308, %v307
        %v338 = vpack.c.b16 %v310, %v309
        %v339 = vpack.c.b16 %v312, %v311
        %v340 = vpack.c.b16 %v314, %v313
        %v341 = vpack.c.b16 %v316, %v315
        %v342 = vpack.c.b16 %v318, %v317
        %v343 = vpack.c.b16 %v320, %v319
        %v344 = vpack.c.b16 %v322, %v321
        %v345 = vpack.c.b16 %v324, %v323
        %v346 = vpack.c.b16 %v326, %v325
        %v347 = vpack.c.b16 %v328, %v327
        %v348 = vpack.c.b16 %v330, %v329
        %v349 = vpack.c.b16 %v332, %v331
        %v350 = vpack.c.b16 %v334, %v333
        %vm351 = vcmask 523264
        %v353 = vsel %vm351, %v263, 0
        %v356 = vsel %vm351, %v264, 0
        %v359 = vsel %vm351, %v265, 0
        %v362 = vsel %vm351, %v266, 0
        %v365 = vsel %vm351, %v267, 0
        %v368 = vsel %vm351, %v268, 0
        %v371 = vsel %vm351, %v269, 0
        %v374 = vsel %vm351, %v270, 0
        %v377 = vsel %vm351, %v335, 0
        %v380 = vsel %vm351, %v336, 0
        %v383 = vsel %vm351, %v337, 0
        %v386 = vsel %vm351, %v338, 0
        %v389 = vsel %vm351, %v339, 0
        %v392 = vsel %vm351, %v340, 0
        %v395 = vsel %vm351, %v341, 0
        %v398 = vsel %vm351, %v342, 0
        %v401 = vsel %vm351, %v343, 0
        %v404 = vsel %vm351, %v344, 0
        %v407 = vsel %vm351, %v345, 0
        %v410 = vsel %vm351, %v346, 0
        %v413 = vsel %vm351, %v347, 0
        %v416 = vsel %vm351, %v348, 0
        %v419 = vsel %vm351, %v349, 0
        %v422 = vsel %vm351, %v350, 0
        %424 = vmatprep.subr.bf16.mxu0 0
        %425 = vmatpush1.bf16.xpose.msra.mxu0 %v377
        %426 = vmatprep.subr.bf16.mxu0 0
        %427 = vmatpush1.bf16.xpose.msra.mxu0 %v380
        %428 = vmatprep.subr.bf16.mxu0 0
        %429 = vmatpush1.bf16.xpose.msra.mxu0 %v383
        %430 = vmatprep.subr.bf16.mxu0 0
        %431 = vmatpush1.bf16.xpose.msra.mxu0 %v386
        %432 = vmatprep.subr.bf16.mxu0 0
        %433 = vmatpush1.bf16.xpose.msra.mxu0 %v389
        %434 = vmatprep.subr.bf16.mxu0 0
        %435 = vmatpush1.bf16.xpose.msra.mxu0 %v392
        %436 = vmatprep.subr.bf16.mxu0 0
        %437 = vmatpush1.bf16.xpose.msra.mxu0 %v395
        %438 = vmatprep.subr.bf16.mxu0 0
        %439 = vmatpush1.bf16.xpose.msra.mxu0 %v398
        %440 = vmatprep.subr.bf16.mxu0 0
        %441 = vmatpush1.bf16.xpose.msra.mxu0 %v401
        %442 = vmatprep.subr.bf16.mxu0 0
        %443 = vmatpush1.bf16.xpose.msra.mxu0 %v404
        %444 = vmatprep.subr.bf16.mxu0 0
        %445 = vmatpush1.bf16.xpose.msra.mxu0 %v407
        %446 = vmatprep.subr.bf16.mxu0 0
        %447 = vmatpush1.bf16.xpose.msra.mxu0 %v410
        %448 = vmatprep.subr.bf16.mxu0 0
        %449 = vmatpush1.bf16.xpose.msra.mxu0 %v413
        %450 = vmatprep.subr.bf16.mxu0 0
        %451 = vmatpush1.bf16.xpose.msra.mxu0 %v416
        %452 = vmatprep.subr.bf16.mxu0 0
        %453 = vmatpush1.bf16.xpose.msra.mxu0 %v419
        %454 = vmatprep.subr.bf16.mxu0 0
        %455 = vmatpush1.bf16.xpose.msra.mxu0 %v422
        %456 = vmatprep.mubr.bf16.mxu0 0
        %457 = vmatmul.mubr.bf16.gmra.mrb[0].mxu0 %v353
        %v458 = vpop.f32.mrb[0].mxu0
        %v459 = vadd.f32 0.0, %v458
        %v460 = vpop.f32.mrb[0].mxu0
        %v461 = vadd.f32 0.0, %v460
        %v462 = vpop.f32.mrb[0].mxu0
        %v463 = vadd.f32 0.0, %v462
        %v464 = vpop.f32.mrb[0].mxu0
        %v465 = vadd.f32 0.0, %v464
        %466 = vmatprep.mubr.bf16.mxu0 0
        %467 = vmatmul.mubr.bf16.gmra.mrb[0].mxu0 %v356
        %v468 = vpop.f32.mrb[0].mxu0
        %v469 = vadd.f32 0.0, %v468
        %v470 = vpop.f32.mrb[0].mxu0
        %v471 = vadd.f32 0.0, %v470
        %v472 = vpop.f32.mrb[0].mxu0
        %v473 = vadd.f32 0.0, %v472
        %v474 = vpop.f32.mrb[0].mxu0
        %v475 = vadd.f32 0.0, %v474
        %476 = vmatprep.mubr.bf16.mxu0 0
        %477 = vmatmul.mubr.bf16.gmra.mrb[0].mxu0 %v359
        %v478 = vpop.f32.mrb[0].mxu0
        %v479 = vadd.f32 0.0, %v478
        %v480 = vpop.f32.mrb[0].mxu0
        %v481 = vadd.f32 0.0, %v480
        %v482 = vpop.f32.mrb[0].mxu0
        %v483 = vadd.f32 0.0, %v482
        %v484 = vpop.f32.mrb[0].mxu0
        %v485 = vadd.f32 0.0, %v484
        %486 = vmatprep.mubr.bf16.mxu0 0
        %487 = vmatmul.mubr.bf16.gmra.mrb[0].mxu0 %v362
        %v488 = vpop.f32.mrb[0].mxu0
        %v489 = vadd.f32 0.0, %v488
        %v490 = vpop.f32.mrb[0].mxu0
        %v491 = vadd.f32 0.0, %v490
        %v492 = vpop.f32.mrb[0].mxu0
        %v493 = vadd.f32 0.0, %v492
        %v494 = vpop.f32.mrb[0].mxu0
        %v495 = vadd.f32 0.0, %v494
        %496 = vmatprep.mubr.bf16.mxu0 0
        %497 = vmatmul.mubr.bf16.gmra.mrb[0].mxu0 %v365
        %v498 = vpop.f32.mrb[0].mxu0
        %v499 = vadd.f32 0.0, %v498
        %v500 = vpop.f32.mrb[0].mxu0
        %v501 = vadd.f32 0.0, %v500
        %v502 = vpop.f32.mrb[0].mxu0
        %v503 = vadd.f32 0.0, %v502
        %v504 = vpop.f32.mrb[0].mxu0
        %v505 = vadd.f32 0.0, %v504
        %506 = vmatprep.mubr.bf16.mxu0 0
        %507 = vmatmul.mubr.bf16.gmra.mrb[0].mxu0 %v368
        %v508 = vpop.f32.mrb[0].mxu0
        %v509 = vadd.f32 0.0, %v508
        %v510 = vpop.f32.mrb[0].mxu0
        %v511 = vadd.f32 0.0, %v510
        %v512 = vpop.f32.mrb[0].mxu0
        %v513 = vadd.f32 0.0, %v512
        %v514 = vpop.f32.mrb[0].mxu0
        %v515 = vadd.f32 0.0, %v514
        %516 = vmatprep.mubr.bf16.mxu0 0
        %517 = vmatmul.mubr.bf16.gmra.mrb[0].mxu0 %v371
        %v518 = vpop.f32.mrb[0].mxu0
        %v519 = vadd.f32 0.0, %v518
        %v520 = vpop.f32.mrb[0].mxu0
        %v521 = vadd.f32 0.0, %v520
        %v522 = vpop.f32.mrb[0].mxu0
        %v523 = vadd.f32 0.0, %v522
        %v524 = vpop.f32.mrb[0].mxu0
        %v525 = vadd.f32 0.0, %v524
        %526 = vmatprep.mubr.bf16.mxu0 0
        %527 = vmatmul.mubr.bf16.gmra.mrb[0].mxu0 %v374
        %v528 = vpop.f32.mrb[0].mxu0
        %v529 = vadd.f32 0.0, %v528
        %v530 = vpop.f32.mrb[0].mxu0
        %v531 = vadd.f32 0.0, %v530
        %v532 = vpop.f32.mrb[0].mxu0
        %v533 = vadd.f32 0.0, %v532
        %v534 = vpop.f32.mrb[0].mxu0
        %v535 = vadd.f32 0.0, %v534
        %536 = vdwg.mxu0
        %v537 = vsub.f32 0.0, %v459
        %v538 = vsub.f32 0.0, %v461
        %v539 = vsub.f32 0.0, %v463
        %v540 = vsub.f32 0.0, %v465
        %v541 = vsub.f32 0.0, %v469
        %v542 = vsub.f32 0.0, %v471
        %v543 = vsub.f32 0.0, %v473
        %v544 = vsub.f32 0.0, %v475
        %v545 = vsub.f32 0.0, %v479
        %v546 = vsub.f32 0.0, %v481
        %v547 = vsub.f32 0.0, %v483
        %v548 = vsub.f32 0.0, %v485
        %v549 = vsub.f32 0.0, %v489
        %v550 = vsub.f32 0.0, %v491
        %v551 = vsub.f32 0.0, %v493
        %v552 = vsub.f32 0.0, %v495
        %v553 = vsub.f32 0.0, %v499
        %v554 = vsub.f32 0.0, %v501
        %v555 = vsub.f32 0.0, %v503
        %v556 = vsub.f32 0.0, %v505
        %v557 = vsub.f32 0.0, %v509
        %v558 = vsub.f32 0.0, %v511
        %v559 = vsub.f32 0.0, %v513
        %v560 = vsub.f32 0.0, %v515
        %v561 = vsub.f32 0.0, %v519
        %v562 = vsub.f32 0.0, %v521
        %v563 = vsub.f32 0.0, %v523
        %v564 = vsub.f32 0.0, %v525
        %v565 = vsub.f32 0.0, %v529
        %v566 = vsub.f32 0.0, %v531
        %v567 = vsub.f32 0.0, %v533
        %v568 = vsub.f32 0.0, %v535
        %v569 = vmul.f32 %v537, 1.442695
        %v570 = vpow.pop %v569
        %v571 = vmul.f32 %v538, 1.442695
        %v572 = vpow.pop %v571
        %v573 = vmul.f32 %v539, 1.442695
        %v574 = vpow.pop %v573
        %v575 = vmul.f32 %v540, 1.442695
        %v576 = vpow.pop %v575
        %v577 = vmul.f32 %v541, 1.442695
        %v578 = vpow.pop %v577
        %v579 = vmul.f32 %v542, 1.442695
        %v580 = vpow.pop %v579
        %v581 = vmul.f32 %v543, 1.442695
        %v582 = vpow.pop %v581
        %v583 = vmul.f32 %v544, 1.442695
        %v584 = vpow.pop %v583
        %v585 = vmul.f32 %v545, 1.442695
        %v586 = vpow.pop %v585
        %v587 = vmul.f32 %v546, 1.442695
        %v588 = vpow.pop %v587
        %v589 = vmul.f32 %v547, 1.442695
        %v590 = vpow.pop %v589
        %v591 = vmul.f32 %v548, 1.442695
        %v592 = vpow.pop %v591
        %v593 = vmul.f32 %v549, 1.442695
        %v594 = vpow.pop %v593
        %v595 = vmul.f32 %v550, 1.442695
        %v596 = vpow.pop %v595
        %v597 = vmul.f32 %v551, 1.442695
        %v598 = vpow.pop %v597
        %v599 = vmul.f32 %v552, 1.442695
        %v600 = vpow.pop %v599
        %v601 = vmul.f32 %v553, 1.442695
        %v602 = vpow.pop %v601
        %v603 = vmul.f32 %v554, 1.442695
        %v604 = vpow.pop %v603
        %v605 = vmul.f32 %v555, 1.442695
        %v606 = vpow.pop %v605
        %v607 = vmul.f32 %v556, 1.442695
        %v608 = vpow.pop %v607
        %v609 = vmul.f32 %v557, 1.442695
        %v610 = vpow.pop %v609
        %v611 = vmul.f32 %v558, 1.442695
        %v612 = vpow.pop %v611
        %v613 = vmul.f32 %v559, 1.442695
        %v614 = vpow.pop %v613
        %v615 = vmul.f32 %v560, 1.442695
        %v616 = vpow.pop %v615
        %v617 = vmul.f32 %v561, 1.442695
        %v618 = vpow.pop %v617
        %v619 = vmul.f32 %v562, 1.442695
        %v620 = vpow.pop %v619
        %v621 = vmul.f32 %v563, 1.442695
        %v622 = vpow.pop %v621
        %v623 = vmul.f32 %v564, 1.442695
        %v624 = vpow.pop %v623
        %v625 = vmul.f32 %v565, 1.442695
        %v626 = vpow.pop %v625
        %v627 = vmul.f32 %v566, 1.442695
        %v628 = vpow.pop %v627
        %v629 = vmul.f32 %v567, 1.442695
        %v630 = vpow.pop %v629
        %v631 = vmul.f32 %v568, 1.442695
        %v632 = vpow.pop %v631
        %v633 = vadd.f32 %v570, 1.0
        %v634 = vadd.f32 %v572, 1.0
        %v635 = vadd.f32 %v574, 1.0
        %v636 = vadd.f32 %v576, 1.0
        %v637 = vadd.f32 %v578, 1.0
        %v638 = vadd.f32 %v580, 1.0
        %v639 = vadd.f32 %v582, 1.0
        %v640 = vadd.f32 %v584, 1.0
        %v641 = vadd.f32 %v586, 1.0
        %v642 = vadd.f32 %v588, 1.0
        %v643 = vadd.f32 %v590, 1.0
        %v644 = vadd.f32 %v592, 1.0
        %v645 = vadd.f32 %v594, 1.0
        %v646 = vadd.f32 %v596, 1.0
        %v647 = vadd.f32 %v598, 1.0
        %v648 = vadd.f32 %v600, 1.0
        %v649 = vadd.f32 %v602, 1.0
        %v650 = vadd.f32 %v604, 1.0
        %v651 = vadd.f32 %v606, 1.0
        %v652 = vadd.f32 %v608, 1.0
        %v653 = vadd.f32 %v610, 1.0
        %v654 = vadd.f32 %v612, 1.0
        %v655 = vadd.f32 %v614, 1.0
        %v656 = vadd.f32 %v616, 1.0
        %v657 = vadd.f32 %v618, 1.0
        %v658 = vadd.f32 %v620, 1.0
        %v659 = vadd.f32 %v622, 1.0
        %v660 = vadd.f32 %v624, 1.0
        %v661 = vadd.f32 %v626, 1.0
        %v662 = vadd.f32 %v628, 1.0
        %v663 = vadd.f32 %v630, 1.0
        %v664 = vadd.f32 %v632, 1.0
        %v665 = vrcp.pop %v633
        %v666 = vrcp.pop %v634
        %v667 = vrcp.pop %v635
        %v668 = vrcp.pop %v636
        %v669 = vrcp.pop %v637
        %v670 = vrcp.pop %v638
        %v671 = vrcp.pop %v639
        %v672 = vrcp.pop %v640
        %v673 = vrcp.pop %v641
        %v674 = vrcp.pop %v642
        %v675 = vrcp.pop %v643
        %v676 = vrcp.pop %v644
        %v677 = vrcp.pop %v645
        %v678 = vrcp.pop %v646
        %v679 = vrcp.pop %v647
        %v680 = vrcp.pop %v648
        %v681 = vrcp.pop %v649
        %v682 = vrcp.pop %v650
        %v683 = vrcp.pop %v651
        %v684 = vrcp.pop %v652
        %v685 = vrcp.pop %v653
        %v686 = vrcp.pop %v654
        %v687 = vrcp.pop %v655
        %v688 = vrcp.pop %v656
        %v689 = vrcp.pop %v657
        %v690 = vrcp.pop %v658
        %v691 = vrcp.pop %v659
        %v692 = vrcp.pop %v660
        %v693 = vrcp.pop %v661
        %v694 = vrcp.pop %v662
        %v695 = vrcp.pop %v663
        %v696 = vrcp.pop %v664
        %697 = vst [vmem:[%s167] sm:$0xff] %v665
        %698 = vst [vmem:[%s167 + $0x8] sm:$0xff] %v666
        %699 = vst [vmem:[%s167 + $0x10] sm:$0xff] %v667
        %700 = vst [vmem:[%s167 + $0x18] sm:$0xff] %v668
        %701 = vst [vmem:[%s167 + $0x20] sm:$0xff] %v669
        %702 = vst [vmem:[%s167 + $0x28] sm:$0xff] %v670
        %703 = vst [vmem:[%s167 + $0x30] sm:$0xff] %v671
        %704 = vst [vmem:[%s167 + $0x38] sm:$0xff] %v672
        %705 = vst [vmem:[%s167 + $0x40] sm:$0xff] %v673
        %706 = vst [vmem:[%s167 + $0x48] sm:$0xff] %v674
        %707 = vst [vmem:[%s167 + $0x50] sm:$0xff] %v675
        %708 = vst [vmem:[%s167 + $0x58] sm:$0xff] %v676
        %709 = vst [vmem:[%s167 + $0x60] sm:$0xff] %v677
        %710 = vst [vmem:[%s167 + $0x68] sm:$0xff] %v678
        %711 = vst [vmem:[%s167 + $0x70] sm:$0xff] %v679
        %712 = vst [vmem:[%s167 + $0x78] sm:$0xff] %v680
        %713 = vst [vmem:[%s167 + $0x80] sm:$0xff] %v681
        %714 = vst [vmem:[%s167 + $0x88] sm:$0xff] %v682
        %715 = vst [vmem:[%s167 + $0x90] sm:$0xff] %v683
        %716 = vst [vmem:[%s167 + $0x98] sm:$0xff] %v684
        %717 = vst [vmem:[%s167 + $0xa0] sm:$0xff] %v685
        %718 = vst [vmem:[%s167 + $0xa8] sm:$0xff] %v686
        %719 = vst [vmem:[%s167 + $0xb0] sm:$0xff] %v687
        %720 = vst [vmem:[%s167 + $0xb8] sm:$0xff] %v688
        %721 = vst [vmem:[%s167 + $0xc0] sm:$0xff] %v689
        %722 = vst [vmem:[%s167 + $0xc8] sm:$0xff] %v690
        %723 = vst [vmem:[%s167 + $0xd0] sm:$0xff] %v691
        %724 = vst [vmem:[%s167 + $0xd8] sm:$0xff] %v692
        %725 = vst [vmem:[%s167 + $0xe0] sm:$0xff] %v693
        %726 = vst [vmem:[%s167 + $0xe8] sm:$0xff] %v694
        %727 = vst [vmem:[%s167 + $0xf0] sm:$0xff] %v695
        %728 = vst [vmem:[%s167 + $0xf8] sm:$0xff] %v696
        %s729 = sand.u32 %s90, 1
        %s730 = scalar_lea.sflag [#allocation3], %s729
        %s731 = sand.u32 %s90, 1
        %s732 = smul.addr %s731, 256
        %s733 = scalar_lea.vmem [#allocation2], %s732
        // Predicated region
        $region29: #{tpu_custom_call.1} parent=27 // pred_check
          %p734 = pneg %p100
        $region30: #{tpu_custom_call.1} parent=27 // pred_check_branch
          %736 = sbr.rel (%p734) target = $region32
        $region31: #{tpu_custom_call.1} parent=27 // pred_region
          %s737 = smul.u32 16, %s20
          %s738 = smul.u32 2, %s21
          %s740 = ssub.s32 4096, 4096
          %741 = vsyncadd %s730, %s740
          %s742 = smul.addr %s737, 2
          %s743 = sadd.s32 %s738, %s742
          %s744 = smul.addr %s743, 128
          %s745 = scalar_lea.hbm %s2, %s744
          %s746 = sshll.u32 %s733, 4
          %s747 = int_to_ptr.vmem [resolvable:$true] %s746
          %752 = dma.vmem_to_hbm [thread:$0]  %s747, 4096, %s745, %s730, 256, 256, 16
        $region32: #{tpu_custom_call.1} parent=27 // pred_fallthru
          _
      $region28: #{tpu_custom_call.1} parent=5 // pred_fallthru
        _
      %p753 = scmp.le.s32.totalorder 2, %s11
      // Predicated region
      $region33: #{tpu_custom_call.1} parent=5 // pred_check
        %p754 = pneg %p753
      $region34: #{tpu_custom_call.1} parent=5 // pred_check_branch
        %756 = sbr.rel (%p754) target = $region36
      $region35: #{tpu_custom_call.1} parent=5 // pred_region
        %s757 = ssub.s32 %s11, 2
        // Predicated region
        $region37: #{tpu_custom_call.1} parent=35 // pred_check
          %p758 = pneg %p106
        $region38: #{tpu_custom_call.1} parent=35 // pred_check_branch
          %760 = sbr.rel (%p758) target = $region40
        $region39: #{tpu_custom_call.1} parent=35 // pred_region
          %s761 = sand.u32 %s91, 1
          %s762 = scalar_lea.sflag [#allocation3], %s761
          %s763 = sand.u32 %s91, 1
          %s764 = smul.addr %s763, 256
          %s765 = scalar_lea.vmem [#allocation2], %s764
          %766 = dma.done %s762, 4096
        $region40: #{tpu_custom_call.1} parent=35 // pred_fallthru
          _
      $region36: #{tpu_custom_call.1} parent=5 // pred_fallthru
        _
    $region6: #{tpu_custom_call.1} parent=1 // loop_footer
      %s15 = sadd.s32 1, %s11
    $region7: #{tpu_custom_call.1} parent=1 // loop_footer_branch
      %10 = sbr.rel target = $region3
    $region8: #{tpu_custom_call.1} parent=1 // loop_exit
      _
    %767 = vsyncpa [#allocation3], 1
    %s768 = scalar_lea.sflag [#allocation3], 1
    %769 = vsyncpa %s768, 1

</llo_original>
